<compile_context>
chip_gen: v5e
topology: v5e:2x2
jax: 0.10.0
libtpu: 0.0.40
codegen_flags: <defaults>
</compile_context>

<pallas_src>
import functools

import jax
import jax.numpy as jnp
from jax.experimental import pallas as pl
from jax.experimental.pallas import tpu as pltpu


def _linear_kernel(b_ref, x_ref, w_ref, o_ref):
    # b_ref: SMEM (1,) scalar-prefetched bias
    # x_ref: (TILE_M, D) VMEM tile of activations
    # w_ref: (1, D)      VMEM-resident lane-dense weight row
    # o_ref: (TILE_M, 1) output tile
    x = x_ref[...].astype(jnp.float32)          # upcast is a no-op for f32 input
    w = w_ref[...].astype(jnp.float32)          # (1, D), broadcasts over rows
    prod = x * w                                # VPU elementwise
    row = jnp.sum(prod, axis=-1, keepdims=True)  # XLU lane reduce -> (TILE_M, 1)
    o_ref[...] = (row + b_ref[0]).astype(o_ref.dtype)


@functools.partial(jax.jit, static_argnames=("tile_m", "compute_dtype"))
def regression_forward(x, weight, bias, *, tile_m=None, compute_dtype=jnp.float32):
    """Forward pass of Regression (nn.Linear(n_dim, 1)).

    Args:
      x:      (B, n_dim) activations
      weight: (1, n_dim) PyTorch nn.Linear weight layout
      bias:   (1,)
      tile_m: optional batch tile size (rows per grid step)
      compute_dtype: dtype x is streamed in (float32 or bfloat16); accumulation
        is always float32.
    Returns:
      (B, 1) float32
    """
    x = jnp.asarray(x, compute_dtype)
    B, D = x.shape
    w_row = jnp.asarray(weight, jnp.float32).reshape(1, D)   # lane-dense row
    b_sc = jnp.asarray(bias, jnp.float32).reshape(1)         # SMEM scalar

    # --- choose a batch tile size ----------------------------------------
    bytes_per_row = D * jnp.dtype(compute_dtype).itemsize
    if tile_m is None:
        # Keep 2 (double-buffered) x tiles under ~8 MiB: safe on v5e's 16 MiB
        # default scoped VMEM, and leaves ample headroom on v6e / v7x.
        budget = 8 * 1024 * 1024
        tile_m = budget // (2 * bytes_per_row)
        tile_m = int(max(8, min(1024, tile_m)))
    # never use a tile larger than the (sublane-rounded) batch itself
    tile_m = min(tile_m, ((B + 7) // 8) * 8)
    tile_m = max(8, (tile_m // 8) * 8)           # multiple of 8 sublanes

    # --- pad ragged batch so every tile is full ---------------------------
    num_tiles = pl.cdiv(B, tile_m)
    B_pad = num_tiles * tile_m
    if B_pad != B:
        x = jnp.pad(x, ((0, B_pad - B), (0, 0)))

    cost = pl.CostEstimate(
        flops=2 * B_pad * D,
        transcendentals=0,
        bytes_accessed=int(B_pad * D * jnp.dtype(compute_dtype).itemsize
                           + 4 * D + 4 * B_pad),
    )

    out = pl.pallas_call(
        _linear_kernel,
        out_shape=jax.ShapeDtypeStruct((B_pad, 1), jnp.float32),
        grid_spec=pltpu.PrefetchScalarGridSpec(
            num_scalar_prefetch=1,            # bias -> SMEM, passed first
            grid=(num_tiles,),
            in_specs=[
                # x: tiled over batch, auto double-buffered by Pallas
                pl.BlockSpec((tile_m, D), lambda i, b: (i, 0)),
                # weight: constant block index -> stays resident in VMEM
                pl.BlockSpec((1, D), lambda i, b: (0, 0)),
            ],
            out_specs=pl.BlockSpec((tile_m, 1), lambda i, b: (i, 0)),
        ),
        compiler_params=pltpu.CompilerParams(
            # batch axis is embarrassingly parallel -> shards across the two
            # TensorCores on v7x; harmless no-op on v5e/v6e.
            dimension_semantics=("parallel",),
        ),
        cost_estimate=cost,
    )(b_sc, x, w_row)

    return out[:B]


if __name__ == "__main__":
    # TODO(synk): only forward() is implemented; training loop / Adam / plotting
    # from the PyTorch module have no Pallas equivalent and are out of scope.
    key = jax.random.PRNGKey(0)
    B, D = 8, 32
    kx, kw, kb = jax.random.split(key, 3)

    # Mimic nn.Linear's U(-1/sqrt(D), 1/sqrt(D)) init, deterministically.
    bound = 1.0 / jnp.sqrt(jnp.float32(D))
    weight = jax.random.uniform(kw, (1, D), jnp.float32, -bound, bound)
    bias = jax.random.uniform(kb, (1,), jnp.float32, -bound, bound)
    x = jax.random.normal(kx, (B, D), jnp.float32)

    out = regression_forward(x, weight, bias)
    out = jax.block_until_ready(out)
    ref = x @ weight.T + bias
    assert out.shape == (B, 1)
    assert jnp.allclose(out, ref, atol=1e-5, rtol=1e-5)

    # Second (still small) check: ragged batch with multiple grid tiles.
    B2 = 300
    x2 = jax.random.normal(jax.random.PRNGKey(1), (B2, D), jnp.float32)
    out2 = jax.block_until_ready(regression_forward(x2, weight, bias, tile_m=128))
    ref2 = x2 @ weight.T + bias
    assert out2.shape == (B2, 1)
    assert jnp.allclose(out2, ref2, atol=1e-5, rtol=1e-5)

    print("KERNEL_OK")
</pallas_src>

<mosaic_0001>
module attributes {stable_mosaic.version = 11 : i64} {
  func.func @_linear_kernel(%arg0: i32, %arg1: memref<1xf32, #tpu.memory_space<smem>>, %arg2: memref<8x32xf32, #tpu.memory_space<vmem>>, %arg3: memref<1x32xf32, #tpu.memory_space<vmem>>, %arg4: memref<8x1xf32, #tpu.memory_space<vmem>>) attributes {dimension_semantics = [#tpu.dimension_semantics<parallel>], iteration_bounds = array<i64: 1>, scalar_prefetch = 1 : i64, scratch_operands = 0 : i64, tpu.core_type = #tpu.core_type<tc>, window_params = [{transform_indices = @transform_0, window_bounds = array<i64: 8, 32>}, {pipeline_mode = #tpu.pipeline_mode<synchronous>, transform_indices = @transform_1, window_bounds = array<i64: 1, 32>}, {transform_indices = @transform_2, window_bounds = array<i64: 8, 1>}]} {
    %c0 = arith.constant 0 : index
    %c0_0 = arith.constant 0 : index
    %0 = vector.load %arg2[%c0, %c0_0] : memref<8x32xf32, #tpu.memory_space<vmem>>, vector<8x32xf32>
    %c0_1 = arith.constant 0 : index
    %c0_2 = arith.constant 0 : index
    %1 = vector.load %arg3[%c0_1, %c0_2] : memref<1x32xf32, #tpu.memory_space<vmem>>, vector<1x32xf32>
    %2 = vector.broadcast %1 : vector<1x32xf32> to vector<8x32xf32>
    %3 = arith.mulf %0, %2 : vector<8x32xf32>
    %cst = arith.constant dense<0.000000e+00> : vector<8xf32>
    %4 = vector.multi_reduction <add>, %3, %cst [1] : vector<8x32xf32> to vector<8xf32>
    %5 = vector.shape_cast %4 : vector<8xf32> to vector<8x1xf32>
    %c0_3 = arith.constant 0 : index
    %6 = memref.load %arg1[%c0_3] : memref<1xf32, #tpu.memory_space<smem>>
    %7 = vector.broadcast %6 : f32 to vector<8x1xf32>
    %8 = arith.addf %5, %7 : vector<8x1xf32>
    %c0_4 = arith.constant 0 : index
    %c0_5 = arith.constant 0 : index
    %9 = vector.load %arg4[%c0_4, %c0_5] : memref<8x1xf32, #tpu.memory_space<vmem>>, vector<8x1xf32>
    tpu.vector_store %arg4[%c0_4, %c0_5], %8 {strides = array<i32>} : memref<8x1xf32, #tpu.memory_space<vmem>>, vector<8x1xf32>,
    return
  }
  func.func @transform_0(%arg0: i32, %arg1: memref<1xf32, #tpu.memory_space<smem>>) -> (i32, i32) {
    %c0_i32 = arith.constant 0 : i32
    %c0_i32_0 = arith.constant 0 : i32
    return %arg0, %c0_i32 : i32, i32
  }
  func.func @transform_1(%arg0: i32, %arg1: memref<1xf32, #tpu.memory_space<smem>>) -> (i32, i32) {
    %c0_i32 = arith.constant 0 : i32
    %c0_i32_0 = arith.constant 0 : i32
    %c0_i32_1 = arith.constant 0 : i32
    return %c0_i32, %c0_i32_0 : i32, i32
  }
  func.func @transform_2(%arg0: i32, %arg1: memref<1xf32, #tpu.memory_space<smem>>) -> (i32, i32) {
    %c0_i32 = arith.constant 0 : i32
    %c0_i32_0 = arith.constant 0 : i32
    return %arg0, %c0_i32 : i32, i32
  }
}

</mosaic_0001>

<llo_original>
// kernel: regression_forward.1
$region0: #{regression_forward.1}
  #allocation0 [shape = 'u32[]', space=smem, size = 0x4, offset = 0x4, fixed_abs, tag = 'smem constant byte address 0x4 - core index']
  #allocation1 [shape = 'u32[72,128]{1,0:T(1,128)}', space=vmem, size = 0x9000, scoped, tag = 'internal scratch']
  #allocation2 [shape = 's32[1]{0}', space=sflag, size = 0x4, scoped, tag = 'scoped memory for regression_forward.1']
  #allocation3 [shape = 'f32[1]{0:T(128)S(6)}', space=smem, size = 0x200, scoped, tag = 'prefetched SMEM operand 0']
  %s0 = inlined_call_operand.<no memory space> [shape: f32[1], index: 0, kind: input, shape index: {}]
  %s1 = inlined_call_operand.hbm [shape: f32[8,32], index: 1, kind: input, shape index: {}]
  %s2 = inlined_call_operand.vmem [shape: f32[1,32], index: 2, kind: input, shape index: {}]
  %s3 = inlined_call_operand.vmem [shape: f32[8,1], index: 3, kind: output, shape index: {}]
  %s4 = sld [smem:[#allocation0]]
  $region22: #{regression_forward.1} parent=0
    _
  %s6 = ssub.s32 1, %s4
  %s7 = scalar_select 0, %s6, %s4
  %8 = sst [smem:[#allocation3]] %s0
  $region1: #{regression_forward.1} parent=0
    #allocation4 [shape = 'u8[4096]{0}', space=vmem, size = 0x1000, scoped, tag = 'input window, operand 1, single buffered']
    #allocation5 [shape = 's32[1]{0}', space=sflag, size = 0x4, scoped, tag = 'scoped memory for regression_forward.1']
    %9 = vsyncpa [#allocation5], 0
    // Predicated region
    $region2: #{regression_forward.1} parent=1 // pred_check
      _
    $region3: #{regression_forward.1} parent=1 // pred_check_branch
      %11 = sbr.rel (0) target = $region5
    $region4: #{regression_forward.1} parent=1 // pred_region
      %13 = vsyncadd [#allocation5], 0
      %s15 = sshll.u32 %s1, 4
      %s16 = int_to_ptr.hbm [resolvable:$true] %s15
      %s17 = sshll.u32 [#allocation4], 4
      %s18 = int_to_ptr.vmem [resolvable:$true] %s17
      %20 = dma.hbm_to_vmem [thread:$0]  %s16, 128, %s18, [#allocation5]
    $region5: #{regression_forward.1} parent=1 // pred_fallthru
      _
    // Predicated region
    $region6: #{regression_forward.1} parent=1 // pred_check
      _
    $region7: #{regression_forward.1} parent=1 // pred_check_branch
      %22 = sbr.rel (0) target = $region9
    $region8: #{regression_forward.1} parent=1 // pred_region
      _
    $region9: #{regression_forward.1} parent=1 // pred_fallthru
      _
    // Predicated region
    $region10: #{regression_forward.1} parent=1 // pred_check
      _
    $region11: #{regression_forward.1} parent=1 // pred_check_branch
      %24 = sbr.rel (0) target = $region13
    $region12: #{regression_forward.1} parent=1 // pred_region
      %26 = dma.done [#allocation5], 128
    $region13: #{regression_forward.1} parent=1 // pred_fallthru
      _
    %v27 = vld [vmem:[#allocation4] sm:$0xff]
    %v28 = vld [vmem:[%s2] sm:$0x1]
    %v30 = vperm.slane %v28, 0
    %v32 = vmul.f32 %v27, %v30
    %vm33 = vcmask 261120
    %v34 = vsel %vm33, %v32, 0.0
    %35 = vadd.xlane.f32.xlu0 %v34
    %v36 = vpop.xlane.xlu0 %35
    %s37 = sld [smem:[#allocation3]]
    %v38 = vstv %s37
    %v39 = vadd.f32 %v36, %v38
    %vm40 = vcmask 7168
    %41 = vst.msk [vmem:[%s3] sm:$0xff] %vm40, %v39
    // Predicated region
    $region14: #{regression_forward.1} parent=1 // pred_check
      _
    $region15: #{regression_forward.1} parent=1 // pred_check_branch
      %43 = sbr.rel (0) target = $region17
    $region16: #{regression_forward.1} parent=1 // pred_region
      _
    $region17: #{regression_forward.1} parent=1 // pred_fallthru
      _
    // Predicated region
    $region18: #{regression_forward.1} parent=1 // pred_check
      _
    $region19: #{regression_forward.1} parent=1 // pred_check_branch
      %45 = sbr.rel (0) target = $region21
    $region20: #{regression_forward.1} parent=1 // pred_region
      _
    $region21: #{regression_forward.1} parent=1 // pred_fallthru
      _
    %46 = vsyncpa [#allocation5], 1

</llo_original>
